<compile_context>
chip_gen: v6e
topology: v6e:2x2x1
jax: 0.10.0
libtpu: 0.0.40
codegen_flags: <defaults>
</compile_context>

<pallas_src>
import functools

import jax
import jax.numpy as jnp
from jax import lax
from jax.experimental import pallas as pl
from jax.experimental.pallas import tpu as pltpu

BN_EPS = 1e-5


def _round_up(n, m):
    return (n + m - 1) // m * m


def _vmem_limit_bytes():
    # Generation-aware VMEM budget: ~3/4 of physical capacity
    # (128 MiB on v5e/v6e -> 96 MiB, 64 MiB on v7x -> 48 MiB).
    cap = 64 * 1024 * 1024
    try:
        info = pltpu.get_tpu_info()
        cap = int(getattr(info, "vmem_capacity_bytes", cap))
    except Exception:
        pass
    return min((cap * 3) // 4, 112 * 1024 * 1024)


def _pick_tile_m(batch, d_in, out_dim, vmem_limit):
    """Batch tile: as large as VMEM allows, never larger than the batch."""
    if batch <= 8:
        return batch  # single full-extent tile (block == full array dim)
    # Bytes that scale with tm: double-buffered x (f32) + out (f32) blocks.
    per_row = 2 * d_in * 4 + 2 * out_dim * 4
    budget = vmem_limit // 3
    for tm in (1024, 512, 256):
        if tm <= batch and tm * per_row <= budget:
            return tm
    # Small / medium batch: one 8-aligned tile no larger than the batch
    # (keeps the block second-minor a multiple of 8 without wrapper padding).
    return (batch // 8) * 8


def _head_kernel(x_ref, w1_ref, gb_ref, w2_ref, b2_ref, out_ref, stats_ref,
                 *cache, inv_b, batch, tm, use_h_cache):
    p = pl.program_id(0)   # 0: fc1 + accumulate BN stats, 1: normalize + fc2
    i = pl.program_id(1)   # batch tile
    ragged = (batch % tm) != 0  # static

    @pl.when(p == 0)
    def _pass0():
        # fc1 on the MXU (bf16 operands cast in-kernel, f32 accumulation).
        h = jnp.dot(x_ref[...].astype(jnp.bfloat16), w1_ref[...],
                    preferred_element_type=jnp.float32)
        if use_h_cache:
            # Persist fc1 output for pass 1 -> x is only read from HBM once.
            cache[0][i] = h.astype(jnp.bfloat16)

        @pl.when(i == 0)
        def _init_stats():
            stats_ref[...] = jnp.zeros_like(stats_ref)

        # Mask rows past the true batch in the (possibly ragged) last tile so
        # they contribute exactly zero to the statistics.
        if ragged:
            row = lax.broadcasted_iota(jnp.int32, h.shape, 0) + i * tm
            hm = jnp.where(row < batch, h, 0.0)
        else:
            hm = h
        # Per-feature sum / sum-of-squares over the full batch.
        stats_ref[0:1, :] += jnp.sum(hm, axis=0, keepdims=True)
        stats_ref[1:2, :] += jnp.sum(hm * hm, axis=0, keepdims=True)

    @pl.when(p == 1)
    def _pass1():
        @pl.when(i == 0)
        def _finalize_stats():
            # Overwrite scratch in place: row 0 <- mean, row 1 <- inv_std.
            mean = stats_ref[0:1, :] * inv_b
            var = jnp.maximum(stats_ref[1:2, :] * inv_b - mean * mean, 0.0)
            stats_ref[0:1, :] = mean
            stats_ref[1:2, :] = lax.rsqrt(var + BN_EPS)

        if use_h_cache:
            h = cache[0][i].astype(jnp.float32)
        else:
            # Fallback: recompute fc1 (only when the h cache doesn't fit VMEM).
            h = jnp.dot(x_ref[...].astype(jnp.bfloat16), w1_ref[...],
                        preferred_element_type=jnp.float32)

        # Fold BN into one scale/shift: y = h * scale + shift (f32 VPU math).
        scale = stats_ref[1:2, :] * gb_ref[0:1, :]           # inv_std * gamma
        shift = gb_ref[1:2, :] - stats_ref[0:1, :] * scale   # beta - mean*scale
        hn = jnp.maximum(h * scale + shift, 0.0).astype(jnp.bfloat16)

        # fc2 on the MXU; written at the true out_dim (rows past the batch are
        # never stored because the last output block is partial).
        out_ref[...] = (
            jnp.dot(hn, w2_ref[...], preferred_element_type=jnp.float32)
            + b2_ref[...]
        ).astype(out_ref.dtype)


def classification_head(x, w1, b1, gamma, beta, w2, b2):
    """Fused fc1 -> BatchNorm1d(training-mode) -> ReLU -> fc2.

    x: (B, input_dim); w1: (input_dim, hidden); w2: (hidden, output_dim);
    b1/gamma/beta: (hidden,); b2: (output_dim,). Returns (B, output_dim) f32.
    """
    # b1 cancels exactly against the training-mode BN mean subtraction.
    del b1

    batch, d_in = x.shape
    hidden = w1.shape[1]
    out_dim = w2.shape[1]

    vmem_limit = _vmem_limit_bytes()
    tm = _pick_tile_m(batch, d_in, out_dim, vmem_limit)
    num_tiles = -(-batch // tm)

    # VMEM accounting (bytes) for the h-cache / single-buffer-weights gates.
    weight_bytes = (d_in * hidden * 2 + hidden * out_dim * 2
                    + 2 * hidden * 4 + out_dim * 4)
    single_buffer_weights = weight_bytes >= (4 << 20)
    wbuf = 1 if single_buffer_weights else 2
    working = (2 * tm * d_in * 4          # x block (f32), double-buffered
               + 2 * tm * out_dim * 4     # out block (f32), double-buffered
               + wbuf * weight_bytes      # constant operands
               + 2 * hidden * 4)          # stats scratch
    h_cache_bytes = num_tiles * tm * hidden * 2
    use_h_cache = (working + h_cache_bytes) <= int(0.85 * vmem_limit)

    # bf16 MXU weight operands; gamma/beta packed into one (2, hidden) slab.
    w1_b = w1.astype(jnp.bfloat16)
    w2_b = w2.astype(jnp.bfloat16)
    gb = jnp.stack([gamma.astype(jnp.float32).reshape(hidden),
                    beta.astype(jnp.float32).reshape(hidden)], axis=0)
    b2_r = b2.astype(jnp.float32).reshape(1, out_dim)

    def _const_spec(shape):
        # Constant-index operands are fetched once; single-buffer them when
        # they are big enough that the duplicate buffer costs real VMEM
        # (matters most on v7x's 64 MiB).
        if single_buffer_weights:
            return pl.BlockSpec(shape, lambda p, i: (0, 0),
                                pipeline_mode=pl.Buffered(1))
        return pl.BlockSpec(shape, lambda p, i: (0, 0))

    if use_h_cache:
        # Pass 1 never reads x: keep the x block parked on the last pass-0
        # block so no extra HBM fetch happens during pass 1.
        x_spec = pl.BlockSpec(
            (tm, d_in), lambda p, i: ((1 - p) * i + p * (num_tiles - 1), 0))
    else:
        x_spec = pl.BlockSpec((tm, d_in), lambda p, i: (i, 0))

    scratch_shapes = [pltpu.VMEM((2, hidden), jnp.float32)]   # [sum; sumsq]
    if use_h_cache:
        scratch_shapes.append(
            pltpu.VMEM((num_tiles, tm, hidden), jnp.bfloat16))  # fc1 cache

    kernel = functools.partial(_head_kernel, inv_b=1.0 / batch, batch=batch,
                               tm=tm, use_h_cache=use_h_cache)

    out = pl.pallas_call(
        kernel,
        out_shape=jax.ShapeDtypeStruct((batch, out_dim), jnp.float32),
        grid=(2, num_tiles),
        in_specs=[
            x_spec,                              # x tile (f32, cast in-kernel)
            _const_spec((d_in, hidden)),         # w1
            _const_spec((2, hidden)),            # [gamma; beta]
            _const_spec((hidden, out_dim)),      # w2
            _const_spec((1, out_dim)),           # b2
        ],
        # Pass 0 never writes the output: alias all pass-0 steps to block 0 so
        # no garbage output writeback happens during the stats pass; pass 1
        # walks and fully overwrites every block.
        out_specs=pl.BlockSpec((tm, out_dim), lambda p, i: (p * i, 0)),
        scratch_shapes=scratch_shapes,
        compiler_params=pltpu.CompilerParams(
            # The batch axis carries the cross-tile BN reduction, so both axes
            # must run sequentially; megacore would need a cross-core reduce.
            dimension_semantics=("arbitrary", "arbitrary"),
            vmem_limit_bytes=vmem_limit,
        ),
    )(x, w1_b, gb, w2_b, b2_r)

    return out


def reference(x, w1, b1, gamma, beta, w2, b2):
    h = x @ w1 + b1
    mean = jnp.mean(h, axis=0, keepdims=True)
    var = jnp.mean((h - mean) ** 2, axis=0, keepdims=True)
    h = (h - mean) * lax.rsqrt(var + BN_EPS) * gamma + beta
    h = jnp.maximum(h, 0.0)
    return h @ w2 + b2


if __name__ == "__main__":
    B, INPUT_DIM, HIDDEN_DIM, OUTPUT_DIM = 8, 32, 64, 16

    key = jax.random.PRNGKey(0)
    kx, kw1, kb1, kg, kbt, kw2, kb2 = jax.random.split(key, 7)

    x = jax.random.normal(kx, (B, INPUT_DIM), jnp.float32)
    w1 = jax.random.normal(kw1, (INPUT_DIM, HIDDEN_DIM), jnp.float32) * 0.05
    b1 = jax.random.normal(kb1, (HIDDEN_DIM,), jnp.float32) * 0.05
    gamma = 1.0 + 0.1 * jax.random.normal(kg, (HIDDEN_DIM,), jnp.float32)
    beta = 0.1 * jax.random.normal(kbt, (HIDDEN_DIM,), jnp.float32)
    w2 = jax.random.normal(kw2, (HIDDEN_DIM, OUTPUT_DIM), jnp.float32) * 0.05
    b2 = jax.random.normal(kb2, (OUTPUT_DIM,), jnp.float32) * 0.05

    out = jax.block_until_ready(
        classification_head(x, w1, b1, gamma, beta, w2, b2))

    ref = reference(x, w1, b1, gamma, beta, w2, b2)
    assert out.shape == (B, OUTPUT_DIM), out.shape
    # bf16 MXU operands (f32 accumulation) vs. f32 reference -> loose tolerance.
    max_err = float(jnp.max(jnp.abs(out - ref)))
    assert jnp.allclose(out, ref, atol=3e-2, rtol=3e-2), (
        f"mismatch vs reference, max abs err = {max_err}")

    print("KERNEL_OK")
</pallas_src>

<mosaic_0001>
module attributes {stable_mosaic.version = 11 : i64} {
  func.func @_head_kernel(%arg0: i32, %arg1: i32, %arg2: memref<8x32xf32, #tpu.memory_space<vmem>>, %arg3: memref<32x64xbf16, #tpu.memory_space<vmem>>, %arg4: memref<2x64xf32, #tpu.memory_space<vmem>>, %arg5: memref<64x16xbf16, #tpu.memory_space<vmem>>, %arg6: memref<1x16xf32, #tpu.memory_space<vmem>>, %arg7: memref<8x16xf32, #tpu.memory_space<vmem>>, %arg8: memref<2x64xf32, #tpu.memory_space<vmem>>, %arg9: memref<1x8x64xbf16, #tpu.memory_space<vmem>>) attributes {dimension_semantics = [#tpu.dimension_semantics<arbitrary>, #tpu.dimension_semantics<arbitrary>], iteration_bounds = array<i64: 2, 1>, scalar_prefetch = 0 : i64, scratch_operands = 2 : i64, tpu.core_type = #tpu.core_type<tc>, window_params = [{transform_indices = @transform_0, window_bounds = array<i64: 8, 32>}, {pipeline_mode = #tpu.pipeline_mode<synchronous>, transform_indices = @transform_1, window_bounds = array<i64: 32, 64>}, {pipeline_mode = #tpu.pipeline_mode<synchronous>, transform_indices = @transform_2, window_bounds = array<i64: 2, 64>}, {pipeline_mode = #tpu.pipeline_mode<synchronous>, transform_indices = @transform_3, window_bounds = array<i64: 64, 16>}, {pipeline_mode = #tpu.pipeline_mode<synchronous>, transform_indices = @transform_4, window_bounds = array<i64: 1, 16>}, {transform_indices = @transform_5, window_bounds = array<i64: 8, 16>}]} {
    %c0_i32 = arith.constant 0 : i32
    %0 = arith.cmpi eq, %arg0, %c0_i32 : i32
    %1 = arith.extui %0 : i1 to i32
    %c0_i32_0 = arith.constant 0 : i32
    %2 = arith.cmpi ne, %1, %c0_i32_0 : i32
    scf.if %2 {
      %c0 = arith.constant 0 : index
      %c0_2 = arith.constant 0 : index
      %6 = vector.load %arg2[%c0, %c0_2] : memref<8x32xf32, #tpu.memory_space<vmem>>, vector<8x32xf32>
      %7 = arith.truncf %6 : vector<8x32xf32> to vector<8x32xbf16>
      %c0_3 = arith.constant 0 : index
      %c0_4 = arith.constant 0 : index
      %8 = vector.load %arg3[%c0_3, %c0_4] : memref<32x64xbf16, #tpu.memory_space<vmem>>, vector<32x64xbf16>
      %cst = arith.constant dense<0.000000e+00> : vector<8x64xf32>
      %9 = tpu.matmul %7, %8, %cst {dimension_numbers = #tpu.dot_dimension_numbers<[1], [0], [0], [1], [0, 0, 1, 1], [], []>} : vector<8x32xbf16>, vector<32x64xbf16>, vector<8x64xf32> -> vector<8x64xf32>
      %10 = arith.truncf %9 : vector<8x64xf32> to vector<8x64xbf16>
      %11 = arith.index_cast %arg1 : i32 to index
      %c0_5 = arith.constant 0 : index
      %c0_6 = arith.constant 0 : index
      %12 = vector.load %arg9[%11, %c0_5, %c0_6] : memref<1x8x64xbf16, #tpu.memory_space<vmem>>, vector<1x8x64xbf16>
      %13 = vector.shape_cast %12 : vector<1x8x64xbf16> to vector<8x64xbf16>
      %14 = vector.shape_cast %10 : vector<8x64xbf16> to vector<1x8x64xbf16>
      tpu.vector_store %arg9[%11, %c0_5, %c0_6], %14 {strides = array<i32>} : memref<1x8x64xbf16, #tpu.memory_space<vmem>>, vector<1x8x64xbf16>,
      %c0_i32_7 = arith.constant 0 : i32
      %15 = arith.cmpi eq, %arg1, %c0_i32_7 : i32
      %16 = arith.extui %15 : i1 to i32
      %c0_i32_8 = arith.constant 0 : i32
      %17 = arith.cmpi ne, %16, %c0_i32_8 : i32
      scf.if %17 {
        %cst_18 = arith.constant 0.000000e+00 : f32
        %29 = vector.broadcast %cst_18 : f32 to vector<2x64xf32>
        %c0_19 = arith.constant 0 : index
        %c0_20 = arith.constant 0 : index
        %30 = vector.load %arg8[%c0_19, %c0_20] : memref<2x64xf32, #tpu.memory_space<vmem>>, vector<2x64xf32>
        tpu.vector_store %arg8[%c0_19, %c0_20], %29 {strides = array<i32>} : memref<2x64xf32, #tpu.memory_space<vmem>>, vector<2x64xf32>,
      } else {
      }
      %c0_9 = arith.constant 0 : index
      %c0_10 = arith.constant 0 : index
      %18 = vector.load %arg8[%c0_9, %c0_10] : memref<2x64xf32, #tpu.memory_space<vmem>>, vector<1x64xf32>
      %cst_11 = arith.constant dense<0.000000e+00> : vector<64xf32>
      %19 = vector.multi_reduction <add>, %9, %cst_11 [0] : vector<8x64xf32> to vector<64xf32>
      %20 = vector.shape_cast %19 : vector<64xf32> to vector<1x64xf32>
      %21 = arith.addf %18, %20 : vector<1x64xf32>
      %c0_12 = arith.constant 0 : index
      %c0_13 = arith.constant 0 : index
      %22 = vector.load %arg8[%c0_12, %c0_13] : memref<2x64xf32, #tpu.memory_space<vmem>>, vector<1x64xf32>
      tpu.vector_store %arg8[%c0_12, %c0_13], %21 {strides = array<i32>} : memref<2x64xf32, #tpu.memory_space<vmem>>, vector<1x64xf32>,
      %c1 = arith.constant 1 : index
      %c0_14 = arith.constant 0 : index
      %23 = vector.load %arg8[%c1, %c0_14] : memref<2x64xf32, #tpu.memory_space<vmem>>, vector<1x64xf32>
      %24 = arith.mulf %9, %9 : vector<8x64xf32>
      %cst_15 = arith.constant dense<0.000000e+00> : vector<64xf32>
      %25 = vector.multi_reduction <add>, %24, %cst_15 [0] : vector<8x64xf32> to vector<64xf32>
      %26 = vector.shape_cast %25 : vector<64xf32> to vector<1x64xf32>
      %27 = arith.addf %23, %26 : vector<1x64xf32>
      %c1_16 = arith.constant 1 : index
      %c0_17 = arith.constant 0 : index
      %28 = vector.load %arg8[%c1_16, %c0_17] : memref<2x64xf32, #tpu.memory_space<vmem>>, vector<1x64xf32>
      tpu.vector_store %arg8[%c1_16, %c0_17], %27 {strides = array<i32>} : memref<2x64xf32, #tpu.memory_space<vmem>>, vector<1x64xf32>,
    } else {
    }
    %c1_i32 = arith.constant 1 : i32
    %3 = arith.cmpi eq, %arg0, %c1_i32 : i32
    %4 = arith.extui %3 : i1 to i32
    %c0_i32_1 = arith.constant 0 : i32
    %5 = arith.cmpi ne, %4, %c0_i32_1 : i32
    scf.if %5 {
      %c0_i32_2 = arith.constant 0 : i32
      %6 = arith.cmpi eq, %arg1, %c0_i32_2 : i32
      %7 = arith.extui %6 : i1 to i32
      %c0_i32_3 = arith.constant 0 : i32
      %8 = arith.cmpi ne, %7, %c0_i32_3 : i32
      scf.if %8 {
        %c0_19 = arith.constant 0 : index
        %c0_20 = arith.constant 0 : index
        %33 = vector.load %arg8[%c0_19, %c0_20] : memref<2x64xf32, #tpu.memory_space<vmem>>, vector<1x64xf32>
        %cst_21 = arith.constant 1.250000e-01 : f32
        %34 = vector.broadcast %cst_21 : f32 to vector<1x64xf32>
        %35 = arith.mulf %33, %34 : vector<1x64xf32>
        %c1_22 = arith.constant 1 : index
        %c0_23 = arith.constant 0 : index
        %36 = vector.load %arg8[%c1_22, %c0_23] : memref<2x64xf32, #tpu.memory_space<vmem>>, vector<1x64xf32>
        %cst_24 = arith.constant 1.250000e-01 : f32
        %37 = vector.broadcast %cst_24 : f32 to vector<1x64xf32>
        %38 = arith.mulf %36, %37 : vector<1x64xf32>
        %39 = arith.mulf %35, %35 : vector<1x64xf32>
        %40 = arith.subf %38, %39 : vector<1x64xf32>
        %cst_25 = arith.constant 0.000000e+00 : f32
        %41 = vector.broadcast %cst_25 : f32 to vector<1x64xf32>
        %42 = arith.maximumf %40, %41 : vector<1x64xf32>
        %c0_26 = arith.constant 0 : index
        %c0_27 = arith.constant 0 : index
        %43 = vector.load %arg8[%c0_26, %c0_27] : memref<2x64xf32, #tpu.memory_space<vmem>>, vector<1x64xf32>
        tpu.vector_store %arg8[%c0_26, %c0_27], %35 {strides = array<i32>} : memref<2x64xf32, #tpu.memory_space<vmem>>, vector<1x64xf32>,
        %cst_28 = arith.constant 9.99999974E-6 : f32
        %44 = vector.broadcast %cst_28 : f32 to vector<1x64xf32>
        %45 = arith.addf %42, %44 : vector<1x64xf32>
        %46 = math.rsqrt %45 : vector<1x64xf32>
        %c1_29 = arith.constant 1 : index
        %c0_30 = arith.constant 0 : index
        %47 = vector.load %arg8[%c1_29, %c0_30] : memref<2x64xf32, #tpu.memory_space<vmem>>, vector<1x64xf32>
        tpu.vector_store %arg8[%c1_29, %c0_30], %46 {strides = array<i32>} : memref<2x64xf32, #tpu.memory_space<vmem>>, vector<1x64xf32>,
      } else {
      }
      %9 = arith.index_cast %arg1 : i32 to index
      %c0 = arith.constant 0 : index
      %c0_4 = arith.constant 0 : index
      %10 = vector.load %arg9[%9, %c0, %c0_4] : memref<1x8x64xbf16, #tpu.memory_space<vmem>>, vector<1x8x64xbf16>
      %11 = vector.shape_cast %10 : vector<1x8x64xbf16> to vector<8x64xbf16>
      %12 = arith.extf %11 : vector<8x64xbf16> to vector<8x64xf32>
      %c1 = arith.constant 1 : index
      %c0_5 = arith.constant 0 : index
      %13 = vector.load %arg8[%c1, %c0_5] : memref<2x64xf32, #tpu.memory_space<vmem>>, vector<1x64xf32>
      %c0_6 = arith.constant 0 : index
      %c0_7 = arith.constant 0 : index
      %14 = vector.load %arg4[%c0_6, %c0_7] : memref<2x64xf32, #tpu.memory_space<vmem>>, vector<1x64xf32>
      %15 = arith.mulf %13, %14 : vector<1x64xf32>
      %c1_8 = arith.constant 1 : index
      %c0_9 = arith.constant 0 : index
      %16 = vector.load %arg4[%c1_8, %c0_9] : memref<2x64xf32, #tpu.memory_space<vmem>>, vector<1x64xf32>
      %c0_10 = arith.constant 0 : index
      %c0_11 = arith.constant 0 : index
      %17 = vector.load %arg8[%c0_10, %c0_11] : memref<2x64xf32, #tpu.memory_space<vmem>>, vector<1x64xf32>
      %18 = arith.mulf %17, %15 : vector<1x64xf32>
      %19 = arith.subf %16, %18 : vector<1x64xf32>
      %20 = vector.broadcast %15 : vector<1x64xf32> to vector<8x64xf32>
      %21 = arith.mulf %12, %20 : vector<8x64xf32>
      %22 = vector.broadcast %19 : vector<1x64xf32> to vector<8x64xf32>
      %23 = arith.addf %21, %22 : vector<8x64xf32>
      %cst = arith.constant 0.000000e+00 : f32
      %24 = vector.broadcast %cst : f32 to vector<8x64xf32>
      %25 = arith.maximumf %23, %24 : vector<8x64xf32>
      %26 = arith.truncf %25 : vector<8x64xf32> to vector<8x64xbf16>
      %c0_12 = arith.constant 0 : index
      %c0_13 = arith.constant 0 : index
      %27 = vector.load %arg5[%c0_12, %c0_13] : memref<64x16xbf16, #tpu.memory_space<vmem>>, vector<64x16xbf16>
      %cst_14 = arith.constant dense<0.000000e+00> : vector<8x16xf32>
      %28 = tpu.matmul %26, %27, %cst_14 {dimension_numbers = #tpu.dot_dimension_numbers<[1], [0], [0], [1], [0, 0, 1, 1], [], []>} : vector<8x64xbf16>, vector<64x16xbf16>, vector<8x16xf32> -> vector<8x16xf32>
      %c0_15 = arith.constant 0 : index
      %c0_16 = arith.constant 0 : index
      %29 = vector.load %arg6[%c0_15, %c0_16] : memref<1x16xf32, #tpu.memory_space<vmem>>, vector<1x16xf32>
      %30 = vector.broadcast %29 : vector<1x16xf32> to vector<8x16xf32>
      %31 = arith.addf %28, %30 : vector<8x16xf32>
      %c0_17 = arith.constant 0 : index
      %c0_18 = arith.constant 0 : index
      %32 = vector.load %arg7[%c0_17, %c0_18] : memref<8x16xf32, #tpu.memory_space<vmem>>, vector<8x16xf32>
      tpu.vector_store %arg7[%c0_17, %c0_18], %31 {strides = array<i32>} : memref<8x16xf32, #tpu.memory_space<vmem>>, vector<8x16xf32>,
    } else {
    }
    return
  }
  func.func @transform_0(%arg0: i32, %arg1: i32) -> (i32, i32) {
    %c1_i32 = arith.constant 1 : i32
    %0 = arith.subi %c1_i32, %arg0 : i32
    %1 = arith.muli %0, %arg1 : i32
    %c0_i32 = arith.constant 0 : i32
    %2 = arith.muli %arg0, %c0_i32 : i32
    %3 = arith.addi %1, %2 : i32
    %c0_i32_0 = arith.constant 0 : i32
    %c0_i32_1 = arith.constant 0 : i32
    return %3, %c0_i32_0 : i32, i32
  }
  func.func @transform_1(%arg0: i32, %arg1: i32) -> (i32, i32) {
    %c0_i32 = arith.constant 0 : i32
    %c0_i32_0 = arith.constant 0 : i32
    %c0_i32_1 = arith.constant 0 : i32
    return %c0_i32, %c0_i32_0 : i32, i32
  }
  func.func @transform_2(%arg0: i32, %arg1: i32) -> (i32, i32) {
    %c0_i32 = arith.constant 0 : i32
    %c0_i32_0 = arith.constant 0 : i32
    %c0_i32_1 = arith.constant 0 : i32
    return %c0_i32, %c0_i32_0 : i32, i32
  }
  func.func @transform_3(%arg0: i32, %arg1: i32) -> (i32, i32) {
    %c0_i32 = arith.constant 0 : i32
    %c0_i32_0 = arith.constant 0 : i32
    %c0_i32_1 = arith.constant 0 : i32
    return %c0_i32, %c0_i32_0 : i32, i32
  }
  func.func @transform_4(%arg0: i32, %arg1: i32) -> (i32, i32) {
    %c0_i32 = arith.constant 0 : i32
    %c0_i32_0 = arith.constant 0 : i32
    %c0_i32_1 = arith.constant 0 : i32
    return %c0_i32, %c0_i32_0 : i32, i32
  }
  func.func @transform_5(%arg0: i32, %arg1: i32) -> (i32, i32) {
    %0 = arith.muli %arg0, %arg1 : i32
    %c0_i32 = arith.constant 0 : i32
    %c0_i32_0 = arith.constant 0 : i32
    return %0, %c0_i32 : i32, i32
  }
}

</mosaic_0001>

<llo_original>
// kernel: tpu_custom_call.1
$region0: #{tpu_custom_call.1}
  #allocation0 [shape = 'u32[]', space=smem, size = 0x4, offset = 0x4, fixed_abs, tag = 'smem constant byte address 0x4 - core index']
  #allocation1 [shape = 'u32[144,128]{1,0:T(1,128)}', space=vmem, size = 0x12000, scoped, tag = 'internal scratch']
  #allocation2 [shape = 'f32[2,64]{1,0:T(2,128)}', space=vmem, size = 0x400, scoped, tag = 'scratch operand']
  #allocation3 [shape = 'bf16[1,8,64]{2,1,0:T(8,128)(2,1)}', space=vmem, size = 0x800, scoped, tag = 'scratch operand']
  %s0 = inlined_call_operand.vmem [shape: f32[8,32], index: 0, kind: input, shape index: {}]
  %s1 = inlined_call_operand.vmem [shape: bf16[32,64], index: 1, kind: input, shape index: {}]
  %s2 = inlined_call_operand.vmem [shape: f32[2,64], index: 2, kind: input, shape index: {}]
  %s3 = inlined_call_operand.vmem [shape: bf16[64,16], index: 3, kind: input, shape index: {}]
  %s4 = inlined_call_operand.vmem [shape: f32[1,16], index: 4, kind: input, shape index: {}]
  %s5 = inlined_call_operand.hbm [shape: f32[8,16], index: 5, kind: output, shape index: {}]
  %s6 = sld [smem:[#allocation0]]
  $region69: #{tpu_custom_call.1} parent=0
    _
  %s8 = ssub.s32 1, %s6
  %s9 = scalar_select 0, %s8, %s6
  $region1: #{tpu_custom_call.1} parent=0
    #allocation4 [shape = 'u8[8192]{0}', space=vmem, size = 0x2000, scoped, tag = 'output window, operand 0']
    #allocation5 [shape = 's32[2]{0}', space=sflag, size = 0x8, scoped, tag = 'scoped memory for tpu_custom_call.1']
    %10 = vsyncpa [#allocation5], 0
    %s11 = scalar_lea.sflag [#allocation5], 1
    %12 = vsyncpa %s11, 0
    loop: start=0, step=1, limit=4
    $region2: #{tpu_custom_call.1} parent=1 // loop_pre_header
      _
    $region3: #{tpu_custom_call.1} parent=1 // loop_header
      %s14 = sphi 0, %s18
      %p15 = scmp.ge.s32.totalorder %s14, 4
      %s21 = sphi 0, %s33
      %s22 = sphi 0, %s29
      %s23 = sphi 0, %s21
      %s24 = sphi 0, %s22
      %s25 = sphi 0, %s23
      %s26 = sphi 0, %s24
      %s40 = sphi 0, %s42
      %s43 = sphi 0, %s40
      %s44 = sphi 0, %s43
      %s60 = sphi 0, %s44
      %s64 = sphi 0, %s64
      %s66 = sphi 0, %s64
      %s67 = sphi 0, %s66
      %s81 = sphi 0, %s67
      %s85 = sphi 0, %s85
      %s87 = sphi 0, %s85
      %s88 = sphi 0, %s87
      %s102 = sphi 0, %s88
      %s106 = sphi 0, %s106
      %s108 = sphi 0, %s106
      %s109 = sphi 0, %s108
      %s123 = sphi 0, %s109
      %s127 = sphi 0, %s127
      %s129 = sphi 0, %s127
      %s130 = sphi 0, %s129
      %s144 = sphi 0, %s130
      %s152 = sphi 0, %s154
      %s155 = sphi 0, %s152
      %s156 = sphi 0, %s155
      %s172 = sphi 0, %s156
    $region4: #{tpu_custom_call.1} parent=1 // loop_header_branch
      %17 = sbr.rel (%p15) target = $region8
    $region5: #{tpu_custom_call.1} parent=1 // loop_body
      %s19 = ssub.s32 %s14, 1
      %s20 = ssub.s32 %s14, 2
      %s27 = sadd.s32 1, %s22
      %p28 = scmp.ge.s32.totalorder %s27, 1
      %s29 = scalar_select %p28, 0, %s27
      %s30 = sadd.s32 1, %s21
      %s31 = scalar_select %p28, %s30, %s21
      %p32 = scmp.ge.s32.totalorder %s31, 2
      %s33 = scalar_select %p32, 0, %s31
      %s34 = ssub.s32 1, %s21
      %s35 = smul.u32 %s34, %s22
      %s36 = ssub.s32 1, %s33
      %s37 = smul.u32 %s36, %s29
      %s38 = ssub.s32 %s35, %s37
      %p39 = scmp.eq.s32.totalorder %s38, 0
      %s41 = sadd.s32 %s40, 1
      %s42 = scalar_select %p39, %s40, %s41
      %p45 = pneg %p39
      %p46 = scmp.eq.s32.totalorder %s14, 1
      %p47 = por %p45, %p46
      %p48 = scmp.ne.s32.totalorder %s40, %s43
      %p49 = scmp.eq.s32.totalorder %s14, 0
      %p50 = por %p48, %p49
      %p51 = scmp.ne.s32.totalorder %s40, %s43
      %p52 = scmp.eq.s32.totalorder %s19, 1
      %p53 = por %p51, %p52
      %p54 = scmp.ne.s32.totalorder %s43, %s44
      %p55 = scmp.eq.s32.totalorder %s19, 0
      %p56 = por %p54, %p55
      %p57 = scmp.ne.s32.totalorder %s43, %s44
      %p58 = scmp.eq.s32.totalorder %s20, 1
      %p59 = por %p57, %p58
      %p61 = scmp.ne.s32.totalorder %s44, %s60
      %p62 = scmp.eq.s32.totalorder %s20, 0
      %p63 = por %p61, %p62
      %s65 = sadd.s32 %s64, 1
      %p68 = scmp.eq.s32.totalorder %s14, 1
      %p69 = scmp.ne.s32.totalorder %s64, %s66
      %p70 = scmp.eq.s32.totalorder %s14, 0
      %p71 = por %p69, %p70
      %p72 = scmp.ne.s32.totalorder %s64, %s66
      %p73 = scmp.eq.s32.totalorder %s19, 1
      %p74 = por %p72, %p73
      %p75 = scmp.ne.s32.totalorder %s66, %s67
      %p76 = scmp.eq.s32.totalorder %s19, 0
      %p77 = por %p75, %p76
      %p78 = scmp.ne.s32.totalorder %s66, %s67
      %p79 = scmp.eq.s32.totalorder %s20, 1
      %p80 = por %p78, %p79
      %p82 = scmp.ne.s32.totalorder %s67, %s81
      %p83 = scmp.eq.s32.totalorder %s20, 0
      %p84 = por %p82, %p83
      %s86 = sadd.s32 %s85, 1
      %p89 = scmp.eq.s32.totalorder %s14, 1
      %p90 = scmp.ne.s32.totalorder %s85, %s87
      %p91 = scmp.eq.s32.totalorder %s14, 0
      %p92 = por %p90, %p91
      %p93 = scmp.ne.s32.totalorder %s85, %s87
      %p94 = scmp.eq.s32.totalorder %s19, 1
      %p95 = por %p93, %p94
      %p96 = scmp.ne.s32.totalorder %s87, %s88
      %p97 = scmp.eq.s32.totalorder %s19, 0
      %p98 = por %p96, %p97
      %p99 = scmp.ne.s32.totalorder %s87, %s88
      %p100 = scmp.eq.s32.totalorder %s20, 1
      %p101 = por %p99, %p100
      %p103 = scmp.ne.s32.totalorder %s88, %s102
      %p104 = scmp.eq.s32.totalorder %s20, 0
      %p105 = por %p103, %p104
      %s107 = sadd.s32 %s106, 1
      %p110 = scmp.eq.s32.totalorder %s14, 1
      %p111 = scmp.ne.s32.totalorder %s106, %s108
      %p112 = scmp.eq.s32.totalorder %s14, 0
      %p113 = por %p111, %p112
      %p114 = scmp.ne.s32.totalorder %s106, %s108
      %p115 = scmp.eq.s32.totalorder %s19, 1
      %p116 = por %p114, %p115
      %p117 = scmp.ne.s32.totalorder %s108, %s109
      %p118 = scmp.eq.s32.totalorder %s19, 0
      %p119 = por %p117, %p118
      %p120 = scmp.ne.s32.totalorder %s108, %s109
      %p121 = scmp.eq.s32.totalorder %s20, 1
      %p122 = por %p120, %p121
      %p124 = scmp.ne.s32.totalorder %s109, %s123
      %p125 = scmp.eq.s32.totalorder %s20, 0
      %p126 = por %p124, %p125
      %s128 = sadd.s32 %s127, 1
      %p131 = scmp.eq.s32.totalorder %s14, 1
      %p132 = scmp.ne.s32.totalorder %s127, %s129
      %p133 = scmp.eq.s32.totalorder %s14, 0
      %p134 = por %p132, %p133
      %p135 = scmp.ne.s32.totalorder %s127, %s129
      %p136 = scmp.eq.s32.totalorder %s19, 1
      %p137 = por %p135, %p136
      %p138 = scmp.ne.s32.totalorder %s129, %s130
      %p139 = scmp.eq.s32.totalorder %s19, 0
      %p140 = por %p138, %p139
      %p141 = scmp.ne.s32.totalorder %s129, %s130
      %p142 = scmp.eq.s32.totalorder %s20, 1
      %p143 = por %p141, %p142
      %p145 = scmp.ne.s32.totalorder %s130, %s144
      %p146 = scmp.eq.s32.totalorder %s20, 0
      %p147 = por %p145, %p146
      %s148 = smul.u32 %s21, %s22
      %s149 = smul.u32 %s33, %s29
      %s150 = ssub.s32 %s148, %s149
      %p151 = scmp.eq.s32.totalorder %s150, 0
      %s153 = sadd.s32 %s152, 1
      %s154 = scalar_select %p151, %s152, %s153
      %p157 = pneg %p151
      %p158 = scmp.eq.s32.totalorder %s14, 1
      %p159 = por %p157, %p158
      %p160 = scmp.ne.s32.totalorder %s152, %s155
      %p161 = scmp.eq.s32.totalorder %s14, 0
      %p162 = por %p160, %p161
      %p163 = scmp.ne.s32.totalorder %s152, %s155
      %p164 = scmp.eq.s32.totalorder %s19, 1
      %p165 = por %p163, %p164
      %p166 = scmp.ne.s32.totalorder %s155, %s156
      %p167 = scmp.eq.s32.totalorder %s19, 0
      %p168 = por %p166, %p167
      %p169 = scmp.ne.s32.totalorder %s155, %s156
      %p170 = scmp.eq.s32.totalorder %s20, 1
      %p171 = por %p169, %p170
      %p173 = scmp.ne.s32.totalorder %s156, %s172
      %p174 = scmp.eq.s32.totalorder %s20, 0
      %p175 = por %p173, %p174
      %p176 = scmp.le.s32.totalorder 1, %s14
      %p177 = scmp.lt.s32.totalorder %s14, 3
      %p178 = pnand %p176, %p177
      %p179 = pneg %p178
      // Predicated region
      $region9: #{tpu_custom_call.1} parent=5 // pred_check
        _
      $region10: #{tpu_custom_call.1} parent=5 // pred_check_branch
        %181 = sbr.rel (%p178) target = $region12
      $region11: #{tpu_custom_call.1} parent=5 // pred_region
        %s182 = ssub.s32 %s14, 1
        // Predicated region
        $region13: #{tpu_custom_call.1} parent=11 // pred_check
          %p183 = pneg %p77
        $region14: #{tpu_custom_call.1} parent=11 // pred_check_branch
          %185 = sbr.rel (%p183) target = $region16
        $region15: #{tpu_custom_call.1} parent=11 // pred_region
          _
        $region16: #{tpu_custom_call.1} parent=11 // pred_fallthru
          _
        // Predicated region
        $region17: #{tpu_custom_call.1} parent=11 // pred_check
          %p186 = pneg %p98
        $region18: #{tpu_custom_call.1} parent=11 // pred_check_branch
          %188 = sbr.rel (%p186) target = $region20
        $region19: #{tpu_custom_call.1} parent=11 // pred_region
          _
        $region20: #{tpu_custom_call.1} parent=11 // pred_fallthru
          _
        // Predicated region
        $region21: #{tpu_custom_call.1} parent=11 // pred_check
          %p189 = pneg %p119
        $region22: #{tpu_custom_call.1} parent=11 // pred_check_branch
          %191 = sbr.rel (%p189) target = $region24
        $region23: #{tpu_custom_call.1} parent=11 // pred_region
          _
        $region24: #{tpu_custom_call.1} parent=11 // pred_fallthru
          _
        // Predicated region
        $region25: #{tpu_custom_call.1} parent=11 // pred_check
          %p192 = pneg %p140
        $region26: #{tpu_custom_call.1} parent=11 // pred_check_branch
          %194 = sbr.rel (%p192) target = $region28
        $region27: #{tpu_custom_call.1} parent=11 // pred_region
          _
        $region28: #{tpu_custom_call.1} parent=11 // pred_fallthru
          _
      $region12: #{tpu_custom_call.1} parent=5 // pred_fallthru
        _
      %p195 = scmp.lt.s32.totalorder %s14, 2
      // Predicated region
      $region29: #{tpu_custom_call.1} parent=5 // pred_check
        %p196 = pneg %p195
      $region30: #{tpu_custom_call.1} parent=5 // pred_check_branch
        %198 = sbr.rel (%p196) target = $region32
      $region31: #{tpu_custom_call.1} parent=5 // pred_region
        // Predicated region
        $region33: #{tpu_custom_call.1} parent=31 // pred_check
          %p199 = pneg %p50
        $region34: #{tpu_custom_call.1} parent=31 // pred_check_branch
          %201 = sbr.rel (%p199) target = $region36
        $region35: #{tpu_custom_call.1} parent=31 // pred_region
          %s202 = ssub.s32 1, %s21
          %s203 = smul.u32 %s202, %s22
          %p204 = scmp.lt.s32.totalorder %s203, 0
          %s205 = scalar_select %p204, %s203, 0
          %s206 = smul.addr %s205, 8
          %s207 = scalar_lea.vmem %s0, %s206
          %s208 = ssub.s32 1, %s21
          %s209 = smul.u32 %s208, %s22
        $region36: #{tpu_custom_call.1} parent=31 // pred_fallthru
          _
      $region32: #{tpu_custom_call.1} parent=5 // pred_fallthru
        _
      %p210 = scmp.le.s32.totalorder 1, %s14
      %p211 = scmp.lt.s32.totalorder %s14, 3
      %p212 = pnand %p210, %p211
      %p213 = pneg %p212
      // Predicated region
      $region37: #{tpu_custom_call.1} parent=5 // pred_check
        _
      $region38: #{tpu_custom_call.1} parent=5 // pred_check_branch
        %215 = sbr.rel (%p212) target = $region40
      $region39: #{tpu_custom_call.1} parent=5 // pred_region
        %s216 = ssub.s32 %s14, 1
        %s217 = ssub.s32 1, %s23
        %s218 = smul.u32 %s217, %s24
        %p219 = scmp.lt.s32.totalorder %s218, 0
        %s220 = scalar_select %p219, %s218, 0
        %s221 = smul.addr %s220, 8
        %s222 = scalar_lea.vmem %s0, %s221
        %p223 = pneg %p56
        %p224 = pneg %p53
        %p225 = pneg %p77
        %p226 = pneg %p74
        %p227 = pneg %p98
        %p228 = pneg %p95
        %p229 = pneg %p119
        %p230 = pneg %p116
        %p231 = pneg %p140
        %p232 = pneg %p137
        %p233 = pneg %p168
        %p234 = pneg %p165
        %s235 = sand.u32 %s155, 1
        %s236 = scalar_lea.sflag [#allocation5], %s235
        %s237 = sand.u32 %s155, 1
        %s238 = smul.addr %s237, 8
        %s239 = scalar_lea.vmem [#allocation4], %s238
        %s240 = ssub.s32 1, %s23
        %s241 = smul.u32 %s240, %s24
        %p242 = scmp.lt.s32.totalorder %s241, 0
        %s243 = scalar_select %p242, %s241, 0
        %s244 = smul.addr %s243, 8
        %s245 = scalar_lea.vmem %s0, %s244
        %s246 = ssub.s32 1, %s23
        %s247 = smul.u32 %s246, %s24
        %s248 = smul.u32 %s23, %s24
        %p250 = scmp.eq.s32.totalorder %s23, 0
        // Predicated region
        $region41: #{tpu_custom_call.1} parent=39 // pred_check
          %p251 = pneg %p250
        $region42: #{tpu_custom_call.1} parent=39 // pred_check_branch
          %253 = sbr.rel (%p251) target = $region44
        $region43: #{tpu_custom_call.1} parent=39 // pred_region
          %v254 = vld [vmem:[%s245] sm:$0xff]
          %v255 = vpack.c.bf16 %v254, %v254
          %v256 = vld [vmem:[%s1] sm:$0xf]
          %v257 = vld [vmem:[%s1 + $0x4] sm:$0xf]
          %v258 = vld [vmem:[%s1 + $0x8] sm:$0xf]
          %v259 = vld [vmem:[%s1 + $0xc] sm:$0xf]
          %v264 = vunpack.c.l.b16 %v256
          %v265 = vunpack.c.l.b16 %v257
          %v266 = vunpack.c.l.b16 %v258
          %v267 = vunpack.c.l.b16 %v259
          %v268 = vpack.c.b16 %v265, %v264
          %v269 = vpack.c.b16 %v267, %v266
          %vm272 = vcmask 261120
          %v274 = vsel %vm272, %v255, 0
          %276 = vmatprep.subr.bf16.mxu0 0
          %277 = vmatpush1.bf16.msra.mxu0 0
          %278 = vmatprep.subr.bf16.mxu0 0
          %279 = vmatpush1.bf16.msra.mxu0 0
          %280 = vmatprep.subr.bf16.mxu0 0
          %281 = vmatpush1.bf16.msra.mxu0 0
          %282 = vmatprep.subr.bf16.mxu0 0
          %283 = vmatpush1.bf16.msra.mxu0 0
          %284 = vmatprep.subr.bf16.mxu0 0
          %285 = vmatpush1.bf16.msra.mxu0 0
          %286 = vmatprep.subr.bf16.mxu0 0
          %287 = vmatpush1.bf16.msra.mxu0 0
          %288 = vmatprep.subr.bf16.mxu0 0
          %289 = vmatpush1.bf16.msra.mxu0 %v269
          %290 = vmatprep.subr.bf16.mxu0 0
          %291 = vmatpush1.bf16.msra.mxu0 %v268
          %292 = vmatprep.subr.bf16.mxu0 0
          %293 = vmatpush2.bf16.msra.mxu0 0
          %294 = vmatprep.subr.bf16.mxu0 0
          %295 = vmatpush2.bf16.msra.mxu0 0
          %296 = vmatprep.subr.bf16.mxu0 0
          %297 = vmatpush2.bf16.msra.mxu0 0
          %298 = vmatprep.subr.bf16.mxu0 0
          %299 = vmatpush2.bf16.msra.mxu0 0
          %300 = vmatprep.subr.bf16.mxu0 0
          %301 = vmatpush2.bf16.msra.mxu0 0
          %302 = vmatprep.subr.bf16.mxu0 0
          %303 = vmatpush2.bf16.msra.mxu0 0
          %304 = vmatprep.subr.bf16.mxu0 0
          %305 = vmatpush2.bf16.msra.mxu0 0
          %306 = vmatprep.subr.bf16.mxu0 0
          %307 = vmatpush2.bf16.msra.mxu0 0
          %308 = vmatprep.mubr.bf16.mxu0 0
          %309 = vmatmul.mubr.bf16.gmra.mxu0 %v274
          %v310 = vpop.f32.mrf.mxu0
          %v311 = vadd.f32 0.0, %v310
          %v312 = vpop.f32.mrf.mxu0
          %v313 = vpop.f32.mrf.mxu0
          %v314 = vpop.f32.mrf.mxu0
          %315 = vdwg.mxu0
          %v316 = vpack.c.bf16 %v311, %v311
          %s317 = smul.addr %s24, 4
          %s318 = scalar_lea.vmem [#allocation3], %s317
          %vm319 = vcmask 519168
          %320 = vst.msk [vmem:[%s318] sm:$0xf] %vm319, %v316
          %p321 = scmp.eq.s32.totalorder %s24, 0
          // Predicated region
          $region45: #{tpu_custom_call.1} parent=43 // pred_check
            %p322 = pneg %p321
          $region46: #{tpu_custom_call.1} parent=43 // pred_check_branch
            %324 = sbr.rel (%p322) target = $region48
          $region47: #{tpu_custom_call.1} parent=43 // pred_region
            %vm325 = vcmask 517120
            %326 = vst.msk [vmem:[#allocation2] sm:$0x3] %vm325, 0.0
          $region48: #{tpu_custom_call.1} parent=43 // pred_fallthru
            _
          %v327 = vld [vmem:[#allocation2] sm:$0x1]
          %vm328 = vcmask 523264
          %v329 = vsel %vm328, %v311, 0.0
          %v330 = vrot.slane %v329, 4
          %v331 = vadd.f32 %v329, %v330
          %v332 = vrot.slane %v331, 2
          %v333 = vadd.f32 %v331, %v332
          %v334 = vrot.slane %v333, 1
          %v335 = vadd.f32 %v333, %v334
          %v336 = vadd.f32 %v327, %v335
          %vm337 = vcmask 516096
          %338 = vst.msk [vmem:[#allocation2] sm:$0x1] %vm337, %v336
          %v339 = vld [vmem:[#allocation2 + $0x1] sm:$0x1]
          %v340 = vmul.f32 %v311, %v311
          %v341 = vsel %vm328, %v340, 0.0
          %v342 = vrot.slane %v341, 4
          %v343 = vadd.f32 %v341, %v342
          %v344 = vrot.slane %v343, 2
          %v345 = vadd.f32 %v343, %v344
          %v346 = vrot.slane %v345, 1
          %v347 = vadd.f32 %v345, %v346
          %v348 = vadd.f32 %v339, %v347
          %349 = vst.msk [vmem:[#allocation2 + $0x1] sm:$0x1] %vm337, %v348
        $region44: #{tpu_custom_call.1} parent=39 // pred_fallthru
          _
        %p350 = scmp.eq.s32.totalorder %s23, 1
        // Predicated region
        $region49: #{tpu_custom_call.1} parent=39 // pred_check
          %p351 = pneg %p350
        $region50: #{tpu_custom_call.1} parent=39 // pred_check_branch
          %353 = sbr.rel (%p351) target = $region52
        $region51: #{tpu_custom_call.1} parent=39 // pred_region
          %p354 = scmp.eq.s32.totalorder %s24, 0
          // Predicated region
          $region53: #{tpu_custom_call.1} parent=51 // pred_check
            %p355 = pneg %p354
          $region54: #{tpu_custom_call.1} parent=51 // pred_check_branch
            %357 = sbr.rel (%p355) target = $region56
          $region55: #{tpu_custom_call.1} parent=51 // pred_region
            %v358 = vld [vmem:[#allocation2] sm:$0x1]
            %v359 = vmul.f32 %v358, 0.125
            %v360 = vld [vmem:[#allocation2 + $0x1] sm:$0x1]
            %v361 = vmul.f32 %v360, 0.125
            %v362 = vmul.f32 %v359, %v359
            %v363 = vsub.f32 %v361, %v362
            %v364 = vmax.f32 %v363, 0.0
            %vm365 = vcmask 516096
            %366 = vst.msk [vmem:[#allocation2] sm:$0x1] %vm365, %v359
            %v367 = vadd.f32 %v364, 1e-05
            %v368 = vrsqrt.pop %v367
            %369 = vst.msk [vmem:[#allocation2 + $0x1] sm:$0x1] %vm365, %v368
          $region56: #{tpu_custom_call.1} parent=51 // pred_fallthru
            _
          %s370 = smul.addr %s24, 4
          %s371 = scalar_lea.vmem [#allocation3], %s370
          %v372 = vld [vmem:[%s371] sm:$0xf]
          %v373 = vunpack.c.l.bf16 %v372
          %v374 = vld [vmem:[#allocation2 + $0x1] sm:$0x1]
          %v375 = vld [vmem:[%s2] sm:$0x1]
          %v376 = vmul.f32 %v374, %v375
          %v377 = vld [vmem:[%s2 + $0x1] sm:$0x1]
          %v378 = vld [vmem:[#allocation2] sm:$0x1]
          %v379 = vmul.f32 %v378, %v376
          %v380 = vsub.f32 %v377, %v379
          %v381 = vlaneseq
          %v382 = vshrl.u32 %v381, 7
          %v383 = vsub.s32 0, %v382
          %v384 = vrot.slane %v376, %v383
          %v385 = vmul.f32 %v373, %v384
          %v386 = vlaneseq
          %v387 = vshrl.u32 %v386, 7
          %v388 = vsub.s32 0, %v387
          %v389 = vrot.slane %v380, %v388
          %v390 = vadd.f32 %v385, %v389
          %v391 = vmax.f32 %v390, 0.0
          %v392 = vpack.c.bf16 %v391, %v391
          %v393 = vld [vmem:[%s3] sm:$0xf]
          %v394 = vld [vmem:[%s3 + $0x4] sm:$0xf]
          %v395 = vld [vmem:[%s3 + $0x8] sm:$0xf]
          %v396 = vld [vmem:[%s3 + $0xc] sm:$0xf]
          %v397 = vld [vmem:[%s3 + $0x10] sm:$0xf]
          %v398 = vld [vmem:[%s3 + $0x14] sm:$0xf]
          %v399 = vld [vmem:[%s3 + $0x18] sm:$0xf]
          %v400 = vld [vmem:[%s3 + $0x1c] sm:$0xf]
          %v401 = vld [vmem:[%s4] sm:$0x1]
          %v403 = vlaneseq
          %v404 = vshrl.u32 %v403, 7
          %v405 = vsub.s32 0, %v404
          %v406 = vrot.slane %v401, %v405
          %v416 = vunpack.c.l.b16 %v393
          %v417 = vunpack.c.l.b16 %v394
          %v418 = vunpack.c.l.b16 %v395
          %v419 = vunpack.c.l.b16 %v396
          %v420 = vunpack.c.l.b16 %v397
          %v421 = vunpack.c.l.b16 %v398
          %v422 = vunpack.c.l.b16 %v399
          %v423 = vunpack.c.l.b16 %v400
          %v424 = vpack.c.b16 %v417, %v416
          %v425 = vpack.c.b16 %v419, %v418
          %v426 = vpack.c.b16 %v421, %v420
          %v427 = vpack.c.b16 %v423, %v422
          %vm432 = vcmask 523264
          %v434 = vsel %vm432, %v392, 0
          %436 = vmatprep.subr.bf16.mxu0 0
          %437 = vmatpush1.bf16.msra.mxu0 0
          %438 = vmatprep.subr.bf16.mxu0 0
          %439 = vmatpush1.bf16.msra.mxu0 0
          %440 = vmatprep.subr.bf16.mxu0 0
          %441 = vmatpush1.bf16.msra.mxu0 0
          %442 = vmatprep.subr.bf16.mxu0 0
          %443 = vmatpush1.bf16.msra.mxu0 0
          %444 = vmatprep.subr.bf16.mxu0 0
          %445 = vmatpush1.bf16.msra.mxu0 %v427
          %446 = vmatprep.subr.bf16.mxu0 0
          %447 = vmatpush1.bf16.msra.mxu0 %v426
          %448 = vmatprep.subr.bf16.mxu0 0
          %449 = vmatpush1.bf16.msra.mxu0 %v425
          %450 = vmatprep.subr.bf16.mxu0 0
          %451 = vmatpush1.bf16.msra.mxu0 %v424
          %452 = vmatprep.subr.bf16.mxu0 0
          %453 = vmatpush2.bf16.msra.mxu0 0
          %454 = vmatprep.subr.bf16.mxu0 0
          %455 = vmatpush2.bf16.msra.mxu0 0
          %456 = vmatprep.subr.bf16.mxu0 0
          %457 = vmatpush2.bf16.msra.mxu0 0
          %458 = vmatprep.subr.bf16.mxu0 0
          %459 = vmatpush2.bf16.msra.mxu0 0
          %460 = vmatprep.subr.bf16.mxu0 0
          %461 = vmatpush2.bf16.msra.mxu0 0
          %462 = vmatprep.subr.bf16.mxu0 0
          %463 = vmatpush2.bf16.msra.mxu0 0
          %464 = vmatprep.subr.bf16.mxu0 0
          %465 = vmatpush2.bf16.msra.mxu0 0
          %466 = vmatprep.subr.bf16.mxu0 0
          %467 = vmatpush2.bf16.msra.mxu0 0
          %468 = vmatprep.mubr.bf16.mxu0 0
          %469 = vmatmul.mubr.bf16.gmra.mxu0 %v434
          %v470 = vpop.f32.mrf.mxu0
          %v471 = vadd.f32 %v406, %v470
          %v472 = vpop.f32.mrf.mxu0
          %v473 = vpop.f32.mrf.mxu0
          %v474 = vpop.f32.mrf.mxu0
          %475 = vdwg.mxu0
          %vm476 = vcmask 130048
          %477 = vst.msk [vmem:[%s239] sm:$0xff] %vm476, %v471
        $region52: #{tpu_custom_call.1} parent=39 // pred_fallthru
          _
        %s478 = sand.u32 %s155, 1
        %s479 = scalar_lea.sflag [#allocation5], %s478
        %s480 = sand.u32 %s155, 1
        %s481 = smul.addr %s480, 8
        %s482 = scalar_lea.vmem [#allocation4], %s481
        // Predicated region
        $region57: #{tpu_custom_call.1} parent=39 // pred_check
          %p483 = pneg %p165
        $region58: #{tpu_custom_call.1} parent=39 // pred_check_branch
          %485 = sbr.rel (%p483) target = $region60
        $region59: #{tpu_custom_call.1} parent=39 // pred_region
          %s486 = smul.u32 %s23, %s24
          %s488 = ssub.s32 128, 128
          %489 = vsyncadd %s479, %s488
          %s490 = smul.addr %s486, 128
          %s491 = scalar_lea.hbm %s5, %s490
          %s493 = sshll.u32 %s482, 4
          %s494 = int_to_ptr.vmem [resolvable:$true] %s493
          %496 = dma.vmem_to_hbm [thread:$0]  %s494, 128, %s491, %s479
        $region60: #{tpu_custom_call.1} parent=39 // pred_fallthru
          _
      $region40: #{tpu_custom_call.1} parent=5 // pred_fallthru
        _
      %p497 = scmp.le.s32.totalorder 2, %s14
      // Predicated region
      $region61: #{tpu_custom_call.1} parent=5 // pred_check
        %p498 = pneg %p497
      $region62: #{tpu_custom_call.1} parent=5 // pred_check_branch
        %500 = sbr.rel (%p498) target = $region64
      $region63: #{tpu_custom_call.1} parent=5 // pred_region
        %s501 = ssub.s32 %s14, 2
        // Predicated region
        $region65: #{tpu_custom_call.1} parent=63 // pred_check
          %p502 = pneg %p171
        $region66: #{tpu_custom_call.1} parent=63 // pred_check_branch
          %504 = sbr.rel (%p502) target = $region68
        $region67: #{tpu_custom_call.1} parent=63 // pred_region
          %s505 = sand.u32 %s156, 1
          %s506 = scalar_lea.sflag [#allocation5], %s505
          %s507 = sand.u32 %s156, 1
          %s508 = smul.addr %s507, 8
          %s509 = scalar_lea.vmem [#allocation4], %s508
          %510 = dma.done %s506, 128
        $region68: #{tpu_custom_call.1} parent=63 // pred_fallthru
          _
      $region64: #{tpu_custom_call.1} parent=5 // pred_fallthru
        _
    $region6: #{tpu_custom_call.1} parent=1 // loop_footer
      %s18 = sadd.s32 1, %s14
    $region7: #{tpu_custom_call.1} parent=1 // loop_footer_branch
      %13 = sbr.rel target = $region3
    $region8: #{tpu_custom_call.1} parent=1 // loop_exit
      _
    %511 = vsyncpa [#allocation5], 1
    %s512 = scalar_lea.sflag [#allocation5], 1
    %513 = vsyncpa %s512, 1

</llo_original>
